<compile_context>
chip_gen: v7x
topology: tpu7x:2x2x1
jax: 0.10.0
libtpu: 0.0.40
codegen_flags: <defaults>
</compile_context>

<pallas_src>
import functools
import math

import jax
import jax.numpy as jnp
from jax import lax
from jax.experimental import pallas as pl
from jax.experimental.pallas import tpu as pltpu


def _group_norm_kernel(x_ref, wb_ref, o_ref, *, eps, num_groups):
    # x_ref:  (TR, cpg_f, sp_f)       -- TR whole normalization groups
    # wb_ref: (2, G, cpg_f, 1)        -- fused weight (row 0) / bias (row 1)
    # o_ref:  (TR, cpg_f, sp_f)
    tr, cpg_f, sp_f = x_ref.shape
    g = num_groups
    inv_n = 1.0 / float(cpg_f * sp_f)

    if tr % g == 0:
        # Block covers whole batches: affine pattern is the full G groups.
        k, wr = tr // g, g
        w = wb_ref[0]                                     # (G, cpg_f, 1)
        b = wb_ref[1]
    else:
        # G % tr == 0: block is a contiguous run of tr groups inside one batch.
        k, wr = 1, tr
        gg = g // tr
        g0 = (pl.program_id(0) % gg) * tr
        w = wb_ref[0, pl.ds(g0, tr)]                      # (tr, cpg_f, 1)
        b = wb_ref[1, pl.ds(g0, tr)]

    x = x_ref[...]
    # Leading-dim-only reshape (no lane/sublane relayout).
    xf = x.astype(jnp.float32).reshape(k, wr, cpg_f, sp_f)

    # Per-group statistics: f32 accumulation, two-pass centered variance.
    mean = jnp.sum(xf, axis=(2, 3), keepdims=True) * inv_n      # (k, wr, 1, 1)
    xc = xf - mean
    var = jnp.sum(xc * xc, axis=(2, 3), keepdims=True) * inv_n
    rstd = lax.rsqrt(var + eps)

    wf = w.astype(jnp.float32)[None]                            # (1, wr, cpg_f, 1)
    bf = b.astype(jnp.float32)[None]
    scale = rstd * wf                                           # (k, wr, cpg_f, 1)

    if jnp.dtype(o_ref.dtype).itemsize >= 4:
        # f32 path: fully f32 math, y = (x - mean) * rstd * w + b.
        y = xc * scale + bf
        o_ref[...] = y.reshape(tr, cpg_f, sp_f).astype(o_ref.dtype)
    else:
        # bf16/fp16 path: stats stay f32; the big FMA runs in the native dtype
        # (halves VMEM/vreg pressure, uses bf16 VALU on v6e/v7x).
        shift = bf - mean * scale                               # (k, wr, cpg_f, 1)
        scale3 = scale.reshape(tr, cpg_f, 1).astype(o_ref.dtype)
        shift3 = shift.reshape(tr, cpg_f, 1).astype(o_ref.dtype)
        o_ref[...] = x * scale3 + shift3


def _choose_fold(cpg, spatial):
    """Fold part of spatial into sublanes when group tiles are sublane-starved.

    Note: a pure reshape can only make the last dim a multiple of 128 if
    `spatial` already is one (folding spatial keeps sp_f | spatial), so the
    condition below is as general as reshape-only folding allows.
    """
    if cpg >= 8 or spatial % 128 != 0:
        return 1
    m = spatial // 128
    for s in range(1, m + 1):
        if m % s == 0 and cpg * s >= 8:
            return s
    return m


def _choose_rows_per_block(num_rows, num_groups, group_bytes,
                           target_bytes=2 << 20):
    """Pick how many whole groups (rows) to process per grid step."""
    cands = [t for t in range(1, num_rows + 1)
             if num_rows % t == 0
             and (t % num_groups == 0 or num_groups % t == 0)]
    fitting = [t for t in cands if t * group_bytes <= target_bytes]
    if not fitting:
        fitting = [min(cands)]

    def steps(t):
        return num_rows // t

    # Prefer >= 4 grid steps (even when possible) so both v7x TensorCores get
    # work and the DMA pipeline can overlap; within a tier take the largest
    # block (fewest per-step overheads).
    for pred in (lambda t: steps(t) >= 4 and steps(t) % 2 == 0,
                 lambda t: steps(t) >= 4,
                 lambda t: steps(t) >= 2,
                 lambda t: True):
        tier = [t for t in fitting if pred(t)]
        if tier:
            return max(tier)
    return 1


def _pad_to(v, m):
    return ((v + m - 1) // m) * m


def liger_group_norm(hidden_states, weight, bias, num_groups, eps=1e-6):
    """Forward of LigerGroupNorm; returns the normalized tensor."""
    assert hidden_states.ndim >= 3, "Input must have at least 3 dimensions"
    N, C = hidden_states.shape[0], hidden_states.shape[1]
    assert C == weight.shape[0] == bias.shape[0]
    assert C % num_groups == 0
    cpg = C // num_groups
    spatial = math.prod(hidden_states.shape[2:])

    s = _choose_fold(cpg, spatial)
    cpg_f, sp_f = cpg * s, spatial // s
    R = N * num_groups

    x = hidden_states.reshape(R, cpg_f, sp_f)                    # free reshape

    # Fused affine parameters: row 0 = weight, row 1 = bias, each expanded for
    # the fold (every channel's value repeated s times, matching the folded
    # row order of x).
    w_f = jnp.repeat(weight, s) if s > 1 else weight
    b_f = jnp.repeat(bias, s) if s > 1 else bias
    wb = jnp.stack([w_f, b_f], axis=0).reshape(2, num_groups, cpg_f, 1)

    itemsize = jnp.dtype(hidden_states.dtype).itemsize
    # Use VMEM-padded bytes per group so small-cpg sublane padding is budgeted.
    group_bytes = _pad_to(cpg_f, 8) * _pad_to(sp_f, 128) * itemsize
    tr = _choose_rows_per_block(R, num_groups, group_bytes)

    # VMEM budget: double-buffered in+out tiles, f32 stat temporaries, the
    # (padded) fused affine buffer, plus headroom.  Cap at 48 MiB so v7x
    # (64 MiB physical) keeps compiler-internal scratch headroom.
    io_block = tr * group_bytes
    f32_block = tr * _pad_to(cpg_f, 8) * _pad_to(sp_f, 128) * 4
    wb_bytes = 2 * num_groups * _pad_to(cpg_f, 8) * 128 * jnp.dtype(weight.dtype).itemsize
    vmem_est = 4 * io_block + 2 * f32_block + 2 * wb_bytes + (2 << 20)
    vmem_limit = int(min(48 << 20, max(24 << 20, vmem_est)))

    kernel = functools.partial(_group_norm_kernel, eps=float(eps),
                               num_groups=num_groups)

    y = pl.pallas_call(
        kernel,
        out_shape=jax.ShapeDtypeStruct((R, cpg_f, sp_f), hidden_states.dtype),
        grid_spec=pltpu.PrefetchScalarGridSpec(
            num_scalar_prefetch=0,
            grid=(R // tr,),
            in_specs=[
                pl.BlockSpec((tr, cpg_f, sp_f), lambda r: (r, 0, 0)),
                # Constant block index -> affine DMA issued once, not per step.
                pl.BlockSpec((2, num_groups, cpg_f, 1), lambda r: (0, 0, 0, 0)),
            ],
            out_specs=pl.BlockSpec((tr, cpg_f, sp_f), lambda r: (r, 0, 0)),
        ),
        compiler_params=pltpu.CompilerParams(
            dimension_semantics=("parallel",),
            vmem_limit_bytes=vmem_limit,
        ),
    )(x, wb)

    return y.reshape(hidden_states.shape)


def _reference_group_norm(x, weight, bias, num_groups, eps):
    N, C = x.shape[0], x.shape[1]
    cpg = C // num_groups
    xr = x.reshape(N, num_groups, cpg, -1).astype(jnp.float32)
    mean = xr.mean(axis=(2, 3), keepdims=True)
    var = ((xr - mean) ** 2).mean(axis=(2, 3), keepdims=True)
    xn = (xr - mean) * lax.rsqrt(var + eps)
    xn = xn.reshape(N, C, -1)
    y = xn * weight[None, :, None] + bias[None, :, None]
    return y.reshape(x.shape).astype(x.dtype)


if __name__ == "__main__":
    # Module config: num_channels=4, num_groups=2, eps=1e-6, bias=False,
    # init_fn='ones'  ->  weight = ones(4), bias = zeros(4)
    num_channels = 4
    num_groups = 2
    eps = 1e-6

    key = jax.random.PRNGKey(0)
    x = jax.random.normal(key, (2, num_channels, 16, 16), dtype=jnp.float32)

    weight = jnp.ones((num_channels,), dtype=jnp.float32)   # init_fn='ones'
    bias = jnp.zeros((num_channels,), dtype=jnp.float32)    # bias=False

    y = liger_group_norm(x, weight, bias, num_groups, eps)
    y = jax.block_until_ready(y)

    y_ref = _reference_group_norm(x, weight, bias, num_groups, eps)
    assert jnp.allclose(y, y_ref, atol=5e-5, rtol=5e-5), "mismatch vs reference"

    print("KERNEL_OK")
</pallas_src>

<mosaic_0001>
module attributes {stable_mosaic.version = 11 : i64} {
  func.func @_group_norm_kernel(%arg0: i32, %arg1: memref<1x4x128xf32, #tpu.memory_space<vmem>>, %arg2: memref<2x2x4x1xf32, #tpu.memory_space<vmem>>, %arg3: memref<1x4x128xf32, #tpu.memory_space<vmem>>) attributes {dimension_semantics = [#tpu.dimension_semantics<parallel>], iteration_bounds = array<i64: 4>, scalar_prefetch = 0 : i64, scratch_operands = 0 : i64, tpu.core_type = #tpu.core_type<tc>, window_params = [{transform_indices = @transform_0, window_bounds = array<i64: 1, 4, 128>}, {pipeline_mode = #tpu.pipeline_mode<synchronous>, transform_indices = @transform_1, window_bounds = array<i64: 2, 2, 4, 1>}, {transform_indices = @transform_2, window_bounds = array<i64: 1, 4, 128>}]} {
    %c2_i32 = arith.constant 2 : i32
    %c0_i32 = arith.constant 0 : i32
    %0 = arith.cmpi eq, %c2_i32, %c0_i32 : i32
    %c1_i32 = arith.constant 1 : i32
    %1 = arith.select %0, %c1_i32, %c2_i32 : i32
    %2 = arith.remsi %arg0, %1 : i32
    %c0_i32_0 = arith.constant 0 : i32
    %3 = arith.cmpi ne, %2, %c0_i32_0 : i32
    %c0_i32_1 = arith.constant 0 : i32
    %4 = arith.cmpi slt, %2, %c0_i32_1 : i32
    %c0_i32_2 = arith.constant 0 : i32
    %5 = arith.cmpi slt, %1, %c0_i32_2 : i32
    %6 = arith.xori %4, %5 : i1
    %7 = arith.andi %6, %3 : i1
    %8 = arith.addi %2, %1 : i32
    %9 = arith.select %7, %8, %2 : i32
    %c1_i32_3 = arith.constant 1 : i32
    %10 = arith.muli %9, %c1_i32_3 : i32
    %c0 = arith.constant 0 : index
    %11 = arith.index_cast %10 : i32 to index
    %c0_4 = arith.constant 0 : index
    %c0_5 = arith.constant 0 : index
    %12 = vector.load %arg2[%c0, %11, %c0_4, %c0_5] : memref<2x2x4x1xf32, #tpu.memory_space<vmem>>, vector<1x1x4x1xf32>
    %13 = vector.shape_cast %12 : vector<1x1x4x1xf32> to vector<1x4x1xf32>
    %c1 = arith.constant 1 : index
    %14 = arith.index_cast %10 : i32 to index
    %c0_6 = arith.constant 0 : index
    %c0_7 = arith.constant 0 : index
    %15 = vector.load %arg2[%c1, %14, %c0_6, %c0_7] : memref<2x2x4x1xf32, #tpu.memory_space<vmem>>, vector<1x1x4x1xf32>
    %16 = vector.shape_cast %15 : vector<1x1x4x1xf32> to vector<1x4x1xf32>
    %c0_8 = arith.constant 0 : index
    %c0_9 = arith.constant 0 : index
    %c0_10 = arith.constant 0 : index
    %17 = vector.load %arg1[%c0_8, %c0_9, %c0_10] : memref<1x4x128xf32, #tpu.memory_space<vmem>>, vector<1x4x128xf32>
    %18 = vector.shape_cast %17 : vector<1x4x128xf32> to vector<1x1x4x128xf32>
    %cst = arith.constant dense<0.000000e+00> : vector<1x1xf32>
    %19 = vector.multi_reduction <add>, %18, %cst [2, 3] : vector<1x1x4x128xf32> to vector<1x1xf32>
    %20 = vector.shape_cast %19 : vector<1x1xf32> to vector<1x1x1x1xf32>
    %cst_11 = arith.constant 0.001953125 : f32
    %21 = vector.broadcast %cst_11 : f32 to vector<1x1x1x1xf32>
    %22 = arith.mulf %20, %21 : vector<1x1x1x1xf32>
    %23 = vector.broadcast %22 : vector<1x1x1x1xf32> to vector<1x1x4x128xf32>
    %24 = arith.subf %18, %23 : vector<1x1x4x128xf32>
    %25 = arith.mulf %24, %24 : vector<1x1x4x128xf32>
    %cst_12 = arith.constant dense<0.000000e+00> : vector<1x1xf32>
    %26 = vector.multi_reduction <add>, %25, %cst_12 [2, 3] : vector<1x1x4x128xf32> to vector<1x1xf32>
    %27 = vector.shape_cast %26 : vector<1x1xf32> to vector<1x1x1x1xf32>
    %cst_13 = arith.constant 0.001953125 : f32
    %28 = vector.broadcast %cst_13 : f32 to vector<1x1x1x1xf32>
    %29 = arith.mulf %27, %28 : vector<1x1x1x1xf32>
    %cst_14 = arith.constant 9.99999997E-7 : f32
    %30 = vector.broadcast %cst_14 : f32 to vector<1x1x1x1xf32>
    %31 = arith.addf %29, %30 : vector<1x1x1x1xf32>
    %32 = math.rsqrt %31 : vector<1x1x1x1xf32>
    %33 = vector.shape_cast %13 : vector<1x4x1xf32> to vector<1x1x4x1xf32>
    %34 = vector.shape_cast %16 : vector<1x4x1xf32> to vector<1x1x4x1xf32>
    %35 = vector.broadcast %32 : vector<1x1x1x1xf32> to vector<1x1x4x1xf32>
    %36 = arith.mulf %35, %33 : vector<1x1x4x1xf32>
    %37 = vector.broadcast %36 : vector<1x1x4x1xf32> to vector<1x1x4x128xf32>
    %38 = arith.mulf %24, %37 : vector<1x1x4x128xf32>
    %39 = vector.broadcast %34 : vector<1x1x4x1xf32> to vector<1x1x4x128xf32>
    %40 = arith.addf %38, %39 : vector<1x1x4x128xf32>
    %41 = vector.shape_cast %40 : vector<1x1x4x128xf32> to vector<1x4x128xf32>
    %c0_15 = arith.constant 0 : index
    %c0_16 = arith.constant 0 : index
    %c0_17 = arith.constant 0 : index
    %42 = vector.load %arg3[%c0_15, %c0_16, %c0_17] : memref<1x4x128xf32, #tpu.memory_space<vmem>>, vector<1x4x128xf32>
    tpu.vector_store %arg3[%c0_15, %c0_16, %c0_17], %41 {strides = array<i32>} : memref<1x4x128xf32, #tpu.memory_space<vmem>>, vector<1x4x128xf32>,
    return
  }
  func.func @transform_0(%arg0: i32) -> (i32, i32, i32) {
    %c0_i32 = arith.constant 0 : i32
    %c0_i32_0 = arith.constant 0 : i32
    %c0_i32_1 = arith.constant 0 : i32
    return %arg0, %c0_i32, %c0_i32_0 : i32, i32, i32
  }
  func.func @transform_1(%arg0: i32) -> (i32, i32, i32, i32) {
    %c0_i32 = arith.constant 0 : i32
    %c0_i32_0 = arith.constant 0 : i32
    %c0_i32_1 = arith.constant 0 : i32
    %c0_i32_2 = arith.constant 0 : i32
    %c0_i32_3 = arith.constant 0 : i32
    return %c0_i32, %c0_i32_0, %c0_i32_1, %c0_i32_2 : i32, i32, i32, i32
  }
  func.func @transform_2(%arg0: i32) -> (i32, i32, i32) {
    %c0_i32 = arith.constant 0 : i32
    %c0_i32_0 = arith.constant 0 : i32
    %c0_i32_1 = arith.constant 0 : i32
    return %arg0, %c0_i32, %c0_i32_0 : i32, i32, i32
  }
}

</mosaic_0001>

<llo_original>
// kernel: tpu_custom_call.1
$region0: #{tpu_custom_call.1}
  #allocation0 [shape = 'u32[]', space=smem, size = 0x4, offset = 0x4, fixed_abs, tag = 'smem constant byte address 0x4 - core index']
  #allocation1 [shape = 'u32[144,128]{1,0:T(1,128)}', space=vmem, size = 0x12000, scoped, tag = 'internal scratch']
  %s0 = inlined_call_operand.vmem [shape: f32[4,4,128], index: 0, kind: input, shape index: {}]
  %s1 = inlined_call_operand.vmem [shape: f32[2,2,4,1], index: 1, kind: input, shape index: {}]
  %s2 = inlined_call_operand.hbm [shape: f32[4,4,128], index: 2, kind: output, shape index: {}]
  %s3 = sld [smem:[#allocation0]]
  $region41: #{tpu_custom_call.1} parent=0
    _
  %s5 = ssub.s32 1, %s3
  %s6 = scalar_select 0, %s5, %s3
  $region1: #{tpu_custom_call.1} parent=0
    #allocation2 [shape = 'u8[4096]{0}', space=vmem, size = 0x1000, scoped, tag = 'output window, operand 0']
    #allocation3 [shape = 's32[2]{0}', space=sflag, size = 0x8, scoped, tag = 'scoped memory for tpu_custom_call.1']
    %7 = vsyncpa [#allocation3], 0
    %s8 = scalar_lea.sflag [#allocation3], 1
    %9 = vsyncpa %s8, 0
    loop: start=0, step=1, limit=6
    $region2: #{tpu_custom_call.1} parent=1 // loop_pre_header
      _
    $region3: #{tpu_custom_call.1} parent=1 // loop_header
      %s11 = sphi 0, %s15
      %p12 = scmp.ge.s32.totalorder %s11, 6
      %s21 = sphi 0, %s23
      %s24 = sphi 0, %s21
      %s25 = sphi 0, %s24
      %s41 = sphi 0, %s25
      %s45 = sphi 0, %s45
      %s47 = sphi 0, %s45
      %s48 = sphi 0, %s47
      %s62 = sphi 0, %s48
      %s68 = sphi 0, %s70
      %s71 = sphi 0, %s68
      %s72 = sphi 0, %s71
      %s88 = sphi 0, %s72
    $region4: #{tpu_custom_call.1} parent=1 // loop_header_branch
      %14 = sbr.rel (%p12) target = $region8
    $region5: #{tpu_custom_call.1} parent=1 // loop_body
      %s16 = ssub.s32 %s11, 1
      %s17 = ssub.s32 %s11, 2
      %s18 = sadd.s32 %s11, 1
      %s19 = ssub.s32 %s11, %s18
      %p20 = scmp.eq.s32.totalorder %s19, 0
      %s22 = sadd.s32 %s21, 1
      %s23 = scalar_select %p20, %s21, %s22
      %p26 = pneg %p20
      %p27 = scmp.eq.s32.totalorder %s11, 3
      %p28 = por %p26, %p27
      %p29 = scmp.ne.s32.totalorder %s21, %s24
      %p30 = scmp.eq.s32.totalorder %s11, 0
      %p31 = por %p29, %p30
      %p32 = scmp.ne.s32.totalorder %s21, %s24
      %p33 = scmp.eq.s32.totalorder %s16, 3
      %p34 = por %p32, %p33
      %p35 = scmp.ne.s32.totalorder %s24, %s25
      %p36 = scmp.eq.s32.totalorder %s16, 0
      %p37 = por %p35, %p36
      %p38 = scmp.ne.s32.totalorder %s24, %s25
      %p39 = scmp.eq.s32.totalorder %s17, 3
      %p40 = por %p38, %p39
      %p42 = scmp.ne.s32.totalorder %s25, %s41
      %p43 = scmp.eq.s32.totalorder %s17, 0
      %p44 = por %p42, %p43
      %s46 = sadd.s32 %s45, 1
      %p49 = scmp.eq.s32.totalorder %s11, 3
      %p50 = scmp.ne.s32.totalorder %s45, %s47
      %p51 = scmp.eq.s32.totalorder %s11, 0
      %p52 = por %p50, %p51
      %p53 = scmp.ne.s32.totalorder %s45, %s47
      %p54 = scmp.eq.s32.totalorder %s16, 3
      %p55 = por %p53, %p54
      %p56 = scmp.ne.s32.totalorder %s47, %s48
      %p57 = scmp.eq.s32.totalorder %s16, 0
      %p58 = por %p56, %p57
      %p59 = scmp.ne.s32.totalorder %s47, %s48
      %p60 = scmp.eq.s32.totalorder %s17, 3
      %p61 = por %p59, %p60
      %p63 = scmp.ne.s32.totalorder %s48, %s62
      %p64 = scmp.eq.s32.totalorder %s17, 0
      %p65 = por %p63, %p64
      %s66 = ssub.s32 %s11, %s18
      %p67 = scmp.eq.s32.totalorder %s66, 0
      %s69 = sadd.s32 %s68, 1
      %s70 = scalar_select %p67, %s68, %s69
      %p73 = pneg %p67
      %p74 = scmp.eq.s32.totalorder %s11, 3
      %p75 = por %p73, %p74
      %p76 = scmp.ne.s32.totalorder %s68, %s71
      %p77 = scmp.eq.s32.totalorder %s11, 0
      %p78 = por %p76, %p77
      %p79 = scmp.ne.s32.totalorder %s68, %s71
      %p80 = scmp.eq.s32.totalorder %s16, 3
      %p81 = por %p79, %p80
      %p82 = scmp.ne.s32.totalorder %s71, %s72
      %p83 = scmp.eq.s32.totalorder %s16, 0
      %p84 = por %p82, %p83
      %p85 = scmp.ne.s32.totalorder %s71, %s72
      %p86 = scmp.eq.s32.totalorder %s17, 3
      %p87 = por %p85, %p86
      %p89 = scmp.ne.s32.totalorder %s72, %s88
      %p90 = scmp.eq.s32.totalorder %s17, 0
      %p91 = por %p89, %p90
      %p92 = scmp.le.s32.totalorder 1, %s11
      %p93 = scmp.lt.s32.totalorder %s11, 5
      %p94 = pnand %p92, %p93
      %p95 = pneg %p94
      // Predicated region
      $region9: #{tpu_custom_call.1} parent=5 // pred_check
        _
      $region10: #{tpu_custom_call.1} parent=5 // pred_check_branch
        %97 = sbr.rel (%p94) target = $region12
      $region11: #{tpu_custom_call.1} parent=5 // pred_region
        %s98 = ssub.s32 %s11, 1
        // Predicated region
        $region13: #{tpu_custom_call.1} parent=11 // pred_check
          %p99 = pneg %p58
        $region14: #{tpu_custom_call.1} parent=11 // pred_check_branch
          %101 = sbr.rel (%p99) target = $region16
        $region15: #{tpu_custom_call.1} parent=11 // pred_region
          _
        $region16: #{tpu_custom_call.1} parent=11 // pred_fallthru
          _
      $region12: #{tpu_custom_call.1} parent=5 // pred_fallthru
        _
      %p102 = scmp.lt.s32.totalorder %s11, 4
      // Predicated region
      $region17: #{tpu_custom_call.1} parent=5 // pred_check
        %p103 = pneg %p102
      $region18: #{tpu_custom_call.1} parent=5 // pred_check_branch
        %105 = sbr.rel (%p103) target = $region20
      $region19: #{tpu_custom_call.1} parent=5 // pred_region
        // Predicated region
        $region21: #{tpu_custom_call.1} parent=19 // pred_check
          %p106 = pneg %p31
        $region22: #{tpu_custom_call.1} parent=19 // pred_check_branch
          %108 = sbr.rel (%p106) target = $region24
        $region23: #{tpu_custom_call.1} parent=19 // pred_region
          %p109 = scmp.lt.s32.totalorder %s11, 3
          %s110 = scalar_select %p109, %s11, 3
          %s111 = smul.addr %s110, 4
          %s112 = scalar_lea.vmem %s0, %s111
        $region24: #{tpu_custom_call.1} parent=19 // pred_fallthru
          _
      $region20: #{tpu_custom_call.1} parent=5 // pred_fallthru
        _
      %p113 = scmp.le.s32.totalorder 1, %s11
      %p114 = scmp.lt.s32.totalorder %s11, 5
      %p115 = pnand %p113, %p114
      %p116 = pneg %p115
      // Predicated region
      $region25: #{tpu_custom_call.1} parent=5 // pred_check
        _
      $region26: #{tpu_custom_call.1} parent=5 // pred_check_branch
        %118 = sbr.rel (%p115) target = $region28
      $region27: #{tpu_custom_call.1} parent=5 // pred_region
        %s119 = ssub.s32 %s11, 1
        %p120 = scmp.lt.s32.totalorder %s16, 3
        %s121 = scalar_select %p120, %s16, 3
        %s122 = smul.addr %s121, 4
        %s123 = scalar_lea.vmem %s0, %s122
        %p124 = pneg %p37
        %p125 = pneg %p34
        %p126 = pneg %p58
        %p127 = pneg %p55
        %p128 = pneg %p84
        %p129 = pneg %p81
        %s130 = sand.u32 %s71, 1
        %s131 = scalar_lea.sflag [#allocation3], %s130
        %s132 = sand.u32 %s71, 1
        %s133 = smul.addr %s132, 4
        %s134 = scalar_lea.vmem [#allocation2], %s133
        %p135 = scmp.lt.s32.totalorder %s16, 3
        %s136 = scalar_select %p135, %s16, 3
        %s137 = smul.addr %s136, 4
        %s138 = scalar_lea.vmem %s0, %s137
        %p139 = scmp.lt.s32.totalorder %s16, 0
        %s140 = ssub.s32 0, %s16
        %s141 = scalar_select %p139, %s140, %s16
        %s142 = sand.u32 %s141, 1
        %s143 = ssub.s32 0, %s142
        %s144 = scalar_select %p139, %s143, %s142
        %p145 = scmp.ne.s32.totalorder %s144, 0
        %p146 = scmp.lt.s32.totalorder %s144, 0
        %p147 = pnand %p146, %p145
        %p148 = pneg %p147
        %s149 = sadd.s32 %s144, 2
        %s150 = scalar_select %p148, %s149, %s144
        %s151 = smul.u32 %s150, 4
        %s152 = scalar_lea.vmem %s1, %s151
        %v153 = vld [vmem:[%s152] sm:$0xf]
        %s154 = sadd.s32 %s151, 8
        %s155 = scalar_lea.vmem %s1, %s154
        %v156 = vld [vmem:[%s155] sm:$0xf]
        %v157 = vld [vmem:[%s138] sm:$0xf]
        %vm158 = vcmask 1043456
        %v159 = vsel %vm158, %v157, 0.0
        %160 = vadd.xlane.f32.xlu0 %v159
        %v161 = vpop.xlane.xlu0 %160
        %v162 = vrot.slane %v161, 4
        %v163 = vadd.f32 %v161, %v162
        %v164 = vrot.slane %v163, 2
        %v165 = vadd.f32 %v163, %v164
        %v166 = vrot.slane %v165, 1
        %v167 = vadd.f32 %v165, %v166
        %v168 = vmul.f32 %v167, 0.001953125
        %v169 = vsub.f32 %v157, %v168
        %v170 = vmul.f32 %v169, %v169
        %v171 = vsel %vm158, %v170, 0.0
        %172 = vadd.xlane.f32.xlu0 %v171
        %v173 = vpop.xlane.xlu0 %172
        %v174 = vrot.slane %v173, 4
        %v175 = vadd.f32 %v173, %v174
        %v176 = vrot.slane %v175, 2
        %v177 = vadd.f32 %v175, %v176
        %v178 = vrot.slane %v177, 1
        %v179 = vadd.f32 %v177, %v178
        %v180 = vmul.f32 %v179, 0.001953125
        %v181 = vadd.f32 %v180, 1e-06
        %v182 = vrsqrt.pop %v181
        %v183 = vmul.f32 %v182, %v153
        %185 = vset.pattern.permute.xlu0 0
        %186 = vperm.xlu0 %185, %v183
        %v187 = vpop.permute.xlu0 %186
        %v189 = vmul.f32 %v169, %v187
        %191 = vset.pattern.permute.xlu0 0
        %192 = vperm.xlu0 %191, %v156
        %v193 = vpop.permute.xlu0 %192
        %v195 = vadd.f32 %v189, %v193
        %196 = vst [vmem:[%s134] sm:$0xf] %v195
        %s197 = sand.u32 %s71, 1
        %s198 = scalar_lea.sflag [#allocation3], %s197
        %s199 = sand.u32 %s71, 1
        %s200 = smul.addr %s199, 4
        %s201 = scalar_lea.vmem [#allocation2], %s200
        // Predicated region
        $region29: #{tpu_custom_call.1} parent=27 // pred_check
          %p202 = pneg %p81
        $region30: #{tpu_custom_call.1} parent=27 // pred_check_branch
          %204 = sbr.rel (%p202) target = $region32
        $region31: #{tpu_custom_call.1} parent=27 // pred_region
          %s206 = ssub.s32 64, 64
          %207 = vsyncadd %s198, %s206
          %s208 = smul.addr %s16, 64
          %s209 = scalar_lea.hbm %s2, %s208
          %s211 = sshll.u32 %s201, 4
          %s212 = int_to_ptr.vmem [resolvable:$true] %s211
          %214 = dma.vmem_to_hbm [thread:$0]  %s212, 64, %s209, %s198
        $region32: #{tpu_custom_call.1} parent=27 // pred_fallthru
          _
      $region28: #{tpu_custom_call.1} parent=5 // pred_fallthru
        _
      %p215 = scmp.le.s32.totalorder 2, %s11
      // Predicated region
      $region33: #{tpu_custom_call.1} parent=5 // pred_check
        %p216 = pneg %p215
      $region34: #{tpu_custom_call.1} parent=5 // pred_check_branch
        %218 = sbr.rel (%p216) target = $region36
      $region35: #{tpu_custom_call.1} parent=5 // pred_region
        %s219 = ssub.s32 %s11, 2
        // Predicated region
        $region37: #{tpu_custom_call.1} parent=35 // pred_check
          %p220 = pneg %p87
        $region38: #{tpu_custom_call.1} parent=35 // pred_check_branch
          %222 = sbr.rel (%p220) target = $region40
        $region39: #{tpu_custom_call.1} parent=35 // pred_region
          %s223 = sand.u32 %s72, 1
          %s224 = scalar_lea.sflag [#allocation3], %s223
          %s225 = sand.u32 %s72, 1
          %s226 = smul.addr %s225, 4
          %s227 = scalar_lea.vmem [#allocation2], %s226
          %228 = dma.done %s224, 64
        $region40: #{tpu_custom_call.1} parent=35 // pred_fallthru
          _
      $region36: #{tpu_custom_call.1} parent=5 // pred_fallthru
        _
    $region6: #{tpu_custom_call.1} parent=1 // loop_footer
      %s15 = sadd.s32 1, %s11
    $region7: #{tpu_custom_call.1} parent=1 // loop_footer_branch
      %10 = sbr.rel target = $region3
    $region8: #{tpu_custom_call.1} parent=1 // loop_exit
      _
    %229 = vsyncpa [#allocation3], 1
    %s230 = scalar_lea.sflag [#allocation3], 1
    %231 = vsyncpa %s230, 1

</llo_original>
